<compile_context>
chip_gen: v6e
topology: v6e:2x2x1
jax: 0.10.0
libtpu: 0.0.40
codegen_flags: <defaults>
</compile_context>

<pallas_src>
import jax
import jax.numpy as jnp
from jax.experimental import pallas as pl
from jax.experimental.pallas import tpu as pltpu


def _head_kernel(x_ref, w1t_ref, b1_ref, w2_ref, b2_ref, o_ref):
    """sigmoid( w2 · relu( W1ᵀ x + b1 ) + b2 ) for one batch tile (columns)."""
    # Layer 1 on the MXU: (H, D) @ (D, block_b) -> (H, block_b), f32 acc.
    h = jnp.dot(w1t_ref[...], x_ref[...], preferred_element_type=jnp.float32)
    h = jnp.maximum(h + b1_ref[...], 0.0)          # bias (lane-bcast) + ReLU, f32 VPU

    # Layer 2 on the MXU: (1, H) @ (H, block_b) -> (1, block_b).
    # Result is already lane-dense along the batch -- no transpose needed.
    z = jnp.dot(w2_ref[...], h, preferred_element_type=jnp.float32)

    # b2 is an SMEM f32 scalar; sigmoid on one dense (1, block_b) row (EUP).
    o_ref[...] = jax.nn.sigmoid(z + b2_ref[0])


def base_model_forward(x_t, w1_t, b1_col, w2_row, b2, *, block_b=None):
    """Pallas call wrapping the synthetic base_model head.

    x_t    : (D, B)  bf16  -- transposed, pre-concatenated activations
    w1_t   : (H, D)  bf16  -- transposed first-layer weight
    b1_col : (H, 1)  f32
    w2_row : (1, H)  f32
    b2     : (1,)    f32   -- SMEM scalar
    returns (B, 1) f32
    """
    d, batch = x_t.shape
    h_dim = w1_t.shape[0]

    if block_b is None:
        # Memory/overhead-bound kernel: biggest tile that still gives >=~4 grid
        # steps (pipelining + v7x megacore), clamped to [128, 1024].
        block_b = max(128, min(1024, pl.next_power_of_2(max(batch // 4, 1))))

    n_tiles = pl.cdiv(batch, block_b)
    bp = n_tiles * block_b  # last input tile may be ragged; tail sliced off below

    in_specs = [
        # activations: batch(lane)-tiled, streamed/pipelined along the grid
        pl.BlockSpec((d, block_b), lambda i: (0, i)),
        # weights/bias: constant index_maps -> VMEM-resident across all steps
        pl.BlockSpec(w1_t.shape, lambda i: (0, 0)),
        pl.BlockSpec(b1_col.shape, lambda i: (0, 0)),
        pl.BlockSpec(w2_row.shape, lambda i: (0, 0)),
        # b2: 4-byte scalar in SMEM (no VMEM window / DMA stream for it)
        pl.BlockSpec(memory_space=pltpu.MemorySpace.SMEM),
    ]
    # Lane-dense output row per grid step.
    out_spec = pl.BlockSpec((1, block_b), lambda i: (0, i))

    flops = 2 * bp * d * h_dim + 2 * bp * h_dim
    bytes_accessed = (
        int(x_t.size) * x_t.dtype.itemsize
        + int(w1_t.size) * w1_t.dtype.itemsize
        + int(b1_col.size) * 4 + int(w2_row.size) * 4 + 4
        + bp * 4)
    cost = pl.CostEstimate(flops=int(flops), transcendentals=int(bp),
                           bytes_accessed=int(bytes_accessed))

    # VMEM budget (per step, double-buffered): x tile 2*2*D*block_b*2B,
    # out 2*block_b*4B, resident weights ~10 KB, f32 h scratch H*block_b*4B.
    # At block_b=1024 that is < 1 MiB -- far under the 32 MiB limit, which is
    # itself safe on v5e/v6e (128 MiB) and v7x (64 MiB physical).
    out = pl.pallas_call(
        _head_kernel,
        out_shape=jax.ShapeDtypeStruct((1, bp), jnp.float32),
        grid=(n_tiles,),
        in_specs=in_specs,
        out_specs=out_spec,
        compiler_params=pltpu.CompilerParams(
            dimension_semantics=("parallel",),   # batch tiles are independent
            vmem_limit_bytes=32 * 1024 * 1024,
        ),
        cost_estimate=cost,
    )(x_t, w1_t, b1_col, w2_row, b2)

    # Drop garbage tail columns from a ragged last tile (columns are
    # independent -- no cross-row coupling in this head) and restore (B, 1).
    return out[0, :batch, None]


def trainer_forward(x_dict, params, *, block_b=None):
    """BaseTrainer.forward: _preprocess (cat on dim=1 + .float()) then base_model.

    The concat + bf16 cast + transpose happen once in the wrapper (a tiny
    fused XLA op); the kernel then streams a single lane-dense (D, B)
    activation array.  Splitting W1 per feature is no longer needed, but the
    concat still relies on dict iteration order matching the torch.cat order
    used when W1 was trained.
    """
    w1, b1, w2, b2 = params            # (D,H), (1,H), (H,1), (1,1)

    feats = [jnp.asarray(v, jnp.float32) for v in x_dict.values()]
    x_cat = jnp.concatenate(feats, axis=1)                    # (B, D) == _preprocess
    x_t = x_cat.astype(jnp.bfloat16).T                        # (D, B) lane-dense batch

    w1_t = jnp.asarray(w1, jnp.float32).T.astype(jnp.bfloat16)  # (H, D) bf16 MXU operand
    b1_col = jnp.reshape(jnp.asarray(b1, jnp.float32), (-1, 1))  # (H, 1)
    w2_row = jnp.reshape(jnp.asarray(w2, jnp.float32), (1, -1))  # (1, H)
    b2_sc = jnp.reshape(jnp.asarray(b2, jnp.float32), (1,))      # (1,) SMEM scalar

    return base_model_forward(x_t, w1_t, b1_col, w2_row, b2_sc, block_b=block_b)


# TODO(synk): CSV chunk loading, optimizer step, backward pass, logging and
# sklearn metrics (roc_auc_score / accuracy / log_loss) are host-side
# training-loop machinery with no Pallas equivalent; only forward() is here.


if __name__ == "__main__":
    key = jax.random.PRNGKey(0)
    k_dense, k_ids, k_emb, k_w1, k_w2 = jax.random.split(key, 5)

    B = 512          # 4 tiles of 128 -> pipelined grid, >=2 steps/TC on v7x
    BLOCK_B = 128    # small demo tile; wrapper auto-picks 512-1024 at scale
    DENSE = 4        # dense feature width
    VOCAB = 32       # sparse feature vocab size
    EMB = 12         # embedding dim
    SEQ = 3          # multi-hot sparse sequence length (summed, reduce='sum')
    D = DENSE + EMB  # concatenated feature width = 16
    H = 128          # base_model hidden dim (lane-width multiple)

    # --- build x dict (mimics _chunk_to_tensor outputs) -------------------
    dense_feat = jax.random.normal(k_dense, (B, DENSE), jnp.float32)

    # sparse feature: emb_dict lookup then .sum(dim=1)  (plain-JAX glue)
    ids = jax.random.randint(k_ids, (B, SEQ), 0, VOCAB)
    emb_table = jax.random.normal(k_emb, (VOCAB, EMB), jnp.float32) * 0.1
    sparse_feat = jnp.take(emb_table, ids, axis=0).sum(axis=1)   # (B, EMB)

    x_dict = {"dense_feat": dense_feat, "sparse_feat": sparse_feat}

    # --- deterministic synthetic base_model parameters --------------------
    w1 = jax.random.normal(k_w1, (D, H), jnp.float32) * (1.0 / jnp.sqrt(D))
    b1 = jnp.zeros((1, H), jnp.float32)
    w2 = jax.random.normal(k_w2, (H, 1), jnp.float32) * (1.0 / jnp.sqrt(H))
    b2 = jnp.zeros((1, 1), jnp.float32)
    params = (w1, b1, w2, b2)

    # --- run kernel --------------------------------------------------------
    y_pred = trainer_forward(x_dict, params, block_b=BLOCK_B)
    jax.block_until_ready(y_pred)
    assert y_pred.shape == (B, 1)

    # Reference with the same mixed-precision recipe (bf16 MXU operands for
    # layer 1, f32 accumulation / activations / layer 2).
    x_cat = jnp.concatenate([dense_feat, sparse_feat], axis=1)
    h_ref = jnp.maximum(
        jnp.dot(x_cat.astype(jnp.bfloat16), w1.astype(jnp.bfloat16),
                preferred_element_type=jnp.float32) + b1, 0.0)
    ref_mixed = jax.nn.sigmoid(
        jnp.dot(h_ref, w2, precision=jax.lax.Precision.HIGHEST) + b2)
    assert jnp.allclose(y_pred, ref_mixed, atol=2e-3, rtol=2e-3)

    # Sanity vs. the pure-f32 BaseTrainer math (loose: bf16 first matmul).
    ref_f32 = jax.nn.sigmoid(jnp.maximum(x_cat @ w1 + b1, 0.0) @ w2 + b2)
    assert jnp.allclose(y_pred, ref_f32, atol=2e-2)

    print("KERNEL_OK")
</pallas_src>

<mosaic_0001>
module attributes {stable_mosaic.version = 11 : i64} {
  func.func @_head_kernel(%arg0: i32, %arg1: memref<16x128xbf16, #tpu.memory_space<vmem>>, %arg2: memref<128x16xbf16, #tpu.memory_space<vmem>>, %arg3: memref<128x1xf32, #tpu.memory_space<vmem>>, %arg4: memref<1x128xf32, #tpu.memory_space<vmem>>, %arg5: memref<1xf32, #tpu.memory_space<smem>>, %arg6: memref<1x128xf32, #tpu.memory_space<vmem>>) attributes {dimension_semantics = [#tpu.dimension_semantics<parallel>], iteration_bounds = array<i64: 4>, scalar_prefetch = 0 : i64, scratch_operands = 0 : i64, tpu.core_type = #tpu.core_type<tc>, window_params = [{transform_indices = @transform_0, window_bounds = array<i64: 16, 128>}, {pipeline_mode = #tpu.pipeline_mode<synchronous>, transform_indices = @transform_1, window_bounds = array<i64: 128, 16>}, {pipeline_mode = #tpu.pipeline_mode<synchronous>, transform_indices = @transform_2, window_bounds = array<i64: 128, 1>}, {pipeline_mode = #tpu.pipeline_mode<synchronous>, transform_indices = @transform_3, window_bounds = array<i64: 1, 128>}, {transform_indices = @transform_4, window_bounds = array<i64: 1>}, {transform_indices = @transform_5, window_bounds = array<i64: 1, 128>}]} {
    %c0 = arith.constant 0 : index
    %c0_0 = arith.constant 0 : index
    %0 = vector.load %arg2[%c0, %c0_0] : memref<128x16xbf16, #tpu.memory_space<vmem>>, vector<128x16xbf16>
    %c0_1 = arith.constant 0 : index
    %c0_2 = arith.constant 0 : index
    %1 = vector.load %arg1[%c0_1, %c0_2] : memref<16x128xbf16, #tpu.memory_space<vmem>>, vector<16x128xbf16>
    %cst = arith.constant dense<0.000000e+00> : vector<128x128xf32>
    %2 = tpu.matmul %0, %1, %cst {dimension_numbers = #tpu.dot_dimension_numbers<[1], [0], [0], [1], [0, 0, 1, 1], [], []>} : vector<128x16xbf16>, vector<16x128xbf16>, vector<128x128xf32> -> vector<128x128xf32>
    %c0_3 = arith.constant 0 : index
    %c0_4 = arith.constant 0 : index
    %3 = vector.load %arg3[%c0_3, %c0_4] : memref<128x1xf32, #tpu.memory_space<vmem>>, vector<128x1xf32>
    %4 = vector.broadcast %3 : vector<128x1xf32> to vector<128x128xf32>
    %5 = arith.addf %2, %4 : vector<128x128xf32>
    %cst_5 = arith.constant 0.000000e+00 : f32
    %6 = vector.broadcast %cst_5 : f32 to vector<128x128xf32>
    %7 = arith.maximumf %5, %6 : vector<128x128xf32>
    %c0_6 = arith.constant 0 : index
    %c0_7 = arith.constant 0 : index
    %8 = vector.load %arg4[%c0_6, %c0_7] : memref<1x128xf32, #tpu.memory_space<vmem>>, vector<1x128xf32>
    %cst_8 = arith.constant dense<0.000000e+00> : vector<1x128xf32>
    %9 = tpu.matmul %8, %7, %cst_8 {dimension_numbers = #tpu.dot_dimension_numbers<[1], [0], [0], [1], [0, 0, 1, 1], [], []>} : vector<1x128xf32>, vector<128x128xf32>, vector<1x128xf32> -> vector<1x128xf32>
    %c0_9 = arith.constant 0 : index
    %10 = memref.load %arg5[%c0_9] : memref<1xf32, #tpu.memory_space<smem>>
    %11 = vector.broadcast %10 : f32 to vector<1x128xf32>
    %12 = arith.addf %9, %11 : vector<1x128xf32>
    %13 = arith.negf %12 : vector<1x128xf32>
    %14 = math.exp %13 : vector<1x128xf32>
    %cst_10 = arith.constant 1.000000e+00 : f32
    %15 = vector.broadcast %cst_10 : f32 to vector<1x128xf32>
    %16 = arith.addf %15, %14 : vector<1x128xf32>
    %17 = arith.divf %15, %16 : vector<1x128xf32>
    %c0_11 = arith.constant 0 : index
    %c0_12 = arith.constant 0 : index
    %18 = vector.load %arg6[%c0_11, %c0_12] : memref<1x128xf32, #tpu.memory_space<vmem>>, vector<1x128xf32>
    tpu.vector_store %arg6[%c0_11, %c0_12], %17 {strides = array<i32>} : memref<1x128xf32, #tpu.memory_space<vmem>>, vector<1x128xf32>,
    return
  }
  func.func @transform_0(%arg0: i32) -> (i32, i32) {
    %c0_i32 = arith.constant 0 : i32
    %c0_i32_0 = arith.constant 0 : i32
    return %c0_i32, %arg0 : i32, i32
  }
  func.func @transform_1(%arg0: i32) -> (i32, i32) {
    %c0_i32 = arith.constant 0 : i32
    %c0_i32_0 = arith.constant 0 : i32
    %c0_i32_1 = arith.constant 0 : i32
    return %c0_i32, %c0_i32_0 : i32, i32
  }
  func.func @transform_2(%arg0: i32) -> (i32, i32) {
    %c0_i32 = arith.constant 0 : i32
    %c0_i32_0 = arith.constant 0 : i32
    %c0_i32_1 = arith.constant 0 : i32
    return %c0_i32, %c0_i32_0 : i32, i32
  }
  func.func @transform_3(%arg0: i32) -> (i32, i32) {
    %c0_i32 = arith.constant 0 : i32
    %c0_i32_0 = arith.constant 0 : i32
    %c0_i32_1 = arith.constant 0 : i32
    return %c0_i32, %c0_i32_0 : i32, i32
  }
  func.func @transform_4(%arg0: i32) -> i32 {
    %c0_i32 = arith.constant 0 : i32
    %c0_i32_0 = arith.constant 0 : i32
    return %c0_i32 : i32
  }
  func.func @transform_5(%arg0: i32) -> (i32, i32) {
    %c0_i32 = arith.constant 0 : i32
    %c0_i32_0 = arith.constant 0 : i32
    return %c0_i32, %arg0 : i32, i32
  }
}

</mosaic_0001>

<llo_original>
// kernel: tpu_custom_call.1
$region0: #{tpu_custom_call.1}
  #allocation0 [shape = 'u32[]', space=smem, size = 0x4, offset = 0x4, fixed_abs, tag = 'smem constant byte address 0x4 - core index']
  #allocation1 [shape = 'u32[144,128]{1,0:T(1,128)}', space=vmem, size = 0x12000, scoped, tag = 'internal scratch']
  #allocation2 [shape = 'f32[1]{0:T(128)S(6)}', space=smem, size = 0x200, scoped, tag = 'scoped memory for tpu_custom_call.1']
  %s0 = inlined_call_operand.vmem [shape: bf16[16,512], index: 0, kind: input, shape index: {}]
  %s1 = inlined_call_operand.vmem [shape: bf16[128,16], index: 1, kind: input, shape index: {}]
  %s2 = inlined_call_operand.vmem [shape: f32[128,1], index: 2, kind: input, shape index: {}]
  %s3 = inlined_call_operand.vmem [shape: f32[1,128], index: 3, kind: input, shape index: {}]
  %s4 = inlined_call_operand.<no memory space> [shape: f32[1], index: 4, kind: input, shape index: {}]
  %s5 = inlined_call_operand.hbm [shape: f32[1,512], index: 5, kind: output, shape index: {}]
  %s6 = sld [smem:[#allocation0]]
  $region94: #{tpu_custom_call.1} parent=0
    _
  %s8 = ssub.s32 1, %s6
  %s9 = scalar_select 0, %s8, %s6
  %10 = sst [smem:[#allocation2]] %s4
  $region1: #{tpu_custom_call.1} parent=0
    #allocation3 [shape = 'u8[8192]{0}', space=vmem, size = 0x2000, scoped, tag = 'input window, operand 0']
    #allocation4 [shape = 'u8[1024]{0}', space=vmem, size = 0x400, scoped, tag = 'output window, operand 0']
    #allocation5 [shape = 's32[2]{0}', space=sflag, size = 0x8, scoped, tag = 'scoped memory for tpu_custom_call.1']
    %11 = vsyncpa [#allocation5], 0
    %s12 = scalar_lea.sflag [#allocation5], 1
    %13 = vsyncpa %s12, 0
    loop: start=0, step=1, limit=6
    $region2: #{tpu_custom_call.1} parent=1 // loop_pre_header
      _
    $region3: #{tpu_custom_call.1} parent=1 // loop_header
      %s15 = sphi 0, %s19
      %p16 = scmp.ge.s32.totalorder %s15, 6
      %s25 = sphi 0, %s27
      %s28 = sphi 0, %s25
      %s29 = sphi 0, %s28
      %s45 = sphi 0, %s29
      %s49 = sphi 0, %s49
      %s51 = sphi 0, %s49
      %s52 = sphi 0, %s51
      %s66 = sphi 0, %s52
      %s70 = sphi 0, %s70
      %s72 = sphi 0, %s70
      %s73 = sphi 0, %s72
      %s87 = sphi 0, %s73
      %s91 = sphi 0, %s91
      %s93 = sphi 0, %s91
      %s94 = sphi 0, %s93
      %s108 = sphi 0, %s94
      %s112 = sphi 0, %s112
      %s114 = sphi 0, %s112
      %s115 = sphi 0, %s114
      %s129 = sphi 0, %s115
      %s135 = sphi 0, %s137
      %s138 = sphi 0, %s135
      %s139 = sphi 0, %s138
      %s155 = sphi 0, %s139
    $region4: #{tpu_custom_call.1} parent=1 // loop_header_branch
      %18 = sbr.rel (%p16) target = $region8
    $region5: #{tpu_custom_call.1} parent=1 // loop_body
      %s20 = ssub.s32 %s15, 1
      %s21 = ssub.s32 %s15, 2
      %s22 = sadd.s32 %s15, 1
      %s23 = ssub.s32 %s15, %s22
      %p24 = scmp.eq.s32.totalorder %s23, 0
      %s26 = sadd.s32 %s25, 1
      %s27 = scalar_select %p24, %s25, %s26
      %p30 = pneg %p24
      %p31 = scmp.eq.s32.totalorder %s15, 3
      %p32 = por %p30, %p31
      %p33 = scmp.ne.s32.totalorder %s25, %s28
      %p34 = scmp.eq.s32.totalorder %s15, 0
      %p35 = por %p33, %p34
      %p36 = scmp.ne.s32.totalorder %s25, %s28
      %p37 = scmp.eq.s32.totalorder %s20, 3
      %p38 = por %p36, %p37
      %p39 = scmp.ne.s32.totalorder %s28, %s29
      %p40 = scmp.eq.s32.totalorder %s20, 0
      %p41 = por %p39, %p40
      %p42 = scmp.ne.s32.totalorder %s28, %s29
      %p43 = scmp.eq.s32.totalorder %s21, 3
      %p44 = por %p42, %p43
      %p46 = scmp.ne.s32.totalorder %s29, %s45
      %p47 = scmp.eq.s32.totalorder %s21, 0
      %p48 = por %p46, %p47
      %s50 = sadd.s32 %s49, 1
      %p53 = scmp.eq.s32.totalorder %s15, 3
      %p54 = scmp.ne.s32.totalorder %s49, %s51
      %p55 = scmp.eq.s32.totalorder %s15, 0
      %p56 = por %p54, %p55
      %p57 = scmp.ne.s32.totalorder %s49, %s51
      %p58 = scmp.eq.s32.totalorder %s20, 3
      %p59 = por %p57, %p58
      %p60 = scmp.ne.s32.totalorder %s51, %s52
      %p61 = scmp.eq.s32.totalorder %s20, 0
      %p62 = por %p60, %p61
      %p63 = scmp.ne.s32.totalorder %s51, %s52
      %p64 = scmp.eq.s32.totalorder %s21, 3
      %p65 = por %p63, %p64
      %p67 = scmp.ne.s32.totalorder %s52, %s66
      %p68 = scmp.eq.s32.totalorder %s21, 0
      %p69 = por %p67, %p68
      %s71 = sadd.s32 %s70, 1
      %p74 = scmp.eq.s32.totalorder %s15, 3
      %p75 = scmp.ne.s32.totalorder %s70, %s72
      %p76 = scmp.eq.s32.totalorder %s15, 0
      %p77 = por %p75, %p76
      %p78 = scmp.ne.s32.totalorder %s70, %s72
      %p79 = scmp.eq.s32.totalorder %s20, 3
      %p80 = por %p78, %p79
      %p81 = scmp.ne.s32.totalorder %s72, %s73
      %p82 = scmp.eq.s32.totalorder %s20, 0
      %p83 = por %p81, %p82
      %p84 = scmp.ne.s32.totalorder %s72, %s73
      %p85 = scmp.eq.s32.totalorder %s21, 3
      %p86 = por %p84, %p85
      %p88 = scmp.ne.s32.totalorder %s73, %s87
      %p89 = scmp.eq.s32.totalorder %s21, 0
      %p90 = por %p88, %p89
      %s92 = sadd.s32 %s91, 1
      %p95 = scmp.eq.s32.totalorder %s15, 3
      %p96 = scmp.ne.s32.totalorder %s91, %s93
      %p97 = scmp.eq.s32.totalorder %s15, 0
      %p98 = por %p96, %p97
      %p99 = scmp.ne.s32.totalorder %s91, %s93
      %p100 = scmp.eq.s32.totalorder %s20, 3
      %p101 = por %p99, %p100
      %p102 = scmp.ne.s32.totalorder %s93, %s94
      %p103 = scmp.eq.s32.totalorder %s20, 0
      %p104 = por %p102, %p103
      %p105 = scmp.ne.s32.totalorder %s93, %s94
      %p106 = scmp.eq.s32.totalorder %s21, 3
      %p107 = por %p105, %p106
      %p109 = scmp.ne.s32.totalorder %s94, %s108
      %p110 = scmp.eq.s32.totalorder %s21, 0
      %p111 = por %p109, %p110
      %s113 = sadd.s32 %s112, 1
      %p116 = scmp.eq.s32.totalorder %s15, 3
      %p117 = scmp.ne.s32.totalorder %s112, %s114
      %p118 = scmp.eq.s32.totalorder %s15, 0
      %p119 = por %p117, %p118
      %p120 = scmp.ne.s32.totalorder %s112, %s114
      %p121 = scmp.eq.s32.totalorder %s20, 3
      %p122 = por %p120, %p121
      %p123 = scmp.ne.s32.totalorder %s114, %s115
      %p124 = scmp.eq.s32.totalorder %s20, 0
      %p125 = por %p123, %p124
      %p126 = scmp.ne.s32.totalorder %s114, %s115
      %p127 = scmp.eq.s32.totalorder %s21, 3
      %p128 = por %p126, %p127
      %p130 = scmp.ne.s32.totalorder %s115, %s129
      %p131 = scmp.eq.s32.totalorder %s21, 0
      %p132 = por %p130, %p131
      %s133 = ssub.s32 %s15, %s22
      %p134 = scmp.eq.s32.totalorder %s133, 0
      %s136 = sadd.s32 %s135, 1
      %s137 = scalar_select %p134, %s135, %s136
      %p140 = pneg %p134
      %p141 = scmp.eq.s32.totalorder %s15, 3
      %p142 = por %p140, %p141
      %p143 = scmp.ne.s32.totalorder %s135, %s138
      %p144 = scmp.eq.s32.totalorder %s15, 0
      %p145 = por %p143, %p144
      %p146 = scmp.ne.s32.totalorder %s135, %s138
      %p147 = scmp.eq.s32.totalorder %s20, 3
      %p148 = por %p146, %p147
      %p149 = scmp.ne.s32.totalorder %s138, %s139
      %p150 = scmp.eq.s32.totalorder %s20, 0
      %p151 = por %p149, %p150
      %p152 = scmp.ne.s32.totalorder %s138, %s139
      %p153 = scmp.eq.s32.totalorder %s21, 3
      %p154 = por %p152, %p153
      %p156 = scmp.ne.s32.totalorder %s139, %s155
      %p157 = scmp.eq.s32.totalorder %s21, 0
      %p158 = por %p156, %p157
      %p159 = scmp.le.s32.totalorder 1, %s15
      %p160 = scmp.lt.s32.totalorder %s15, 5
      %p161 = pnand %p159, %p160
      %p162 = pneg %p161
      // Predicated region
      $region9: #{tpu_custom_call.1} parent=5 // pred_check
        _
      $region10: #{tpu_custom_call.1} parent=5 // pred_check_branch
        %164 = sbr.rel (%p161) target = $region12
      $region11: #{tpu_custom_call.1} parent=5 // pred_region
        %s165 = ssub.s32 %s15, 1
        // Predicated region
        $region13: #{tpu_custom_call.1} parent=11 // pred_check
          %p166 = pneg %p62
        $region14: #{tpu_custom_call.1} parent=11 // pred_check_branch
          %168 = sbr.rel (%p166) target = $region16
        $region15: #{tpu_custom_call.1} parent=11 // pred_region
          _
        $region16: #{tpu_custom_call.1} parent=11 // pred_fallthru
          _
        // Predicated region
        $region17: #{tpu_custom_call.1} parent=11 // pred_check
          %p169 = pneg %p83
        $region18: #{tpu_custom_call.1} parent=11 // pred_check_branch
          %171 = sbr.rel (%p169) target = $region20
        $region19: #{tpu_custom_call.1} parent=11 // pred_region
          _
        $region20: #{tpu_custom_call.1} parent=11 // pred_fallthru
          _
        // Predicated region
        $region21: #{tpu_custom_call.1} parent=11 // pred_check
          %p172 = pneg %p104
        $region22: #{tpu_custom_call.1} parent=11 // pred_check_branch
          %174 = sbr.rel (%p172) target = $region24
        $region23: #{tpu_custom_call.1} parent=11 // pred_region
          _
        $region24: #{tpu_custom_call.1} parent=11 // pred_fallthru
          _
        // Predicated region
        $region25: #{tpu_custom_call.1} parent=11 // pred_check
          %p175 = pneg %p125
        $region26: #{tpu_custom_call.1} parent=11 // pred_check_branch
          %177 = sbr.rel (%p175) target = $region28
        $region27: #{tpu_custom_call.1} parent=11 // pred_region
          _
        $region28: #{tpu_custom_call.1} parent=11 // pred_fallthru
          _
      $region12: #{tpu_custom_call.1} parent=5 // pred_fallthru
        _
      %p178 = scmp.lt.s32.totalorder %s15, 4
      // Predicated region
      $region29: #{tpu_custom_call.1} parent=5 // pred_check
        %p179 = pneg %p178
      $region30: #{tpu_custom_call.1} parent=5 // pred_check_branch
        %181 = sbr.rel (%p179) target = $region32
      $region31: #{tpu_custom_call.1} parent=5 // pred_region
        // Predicated region
        $region33: #{tpu_custom_call.1} parent=31 // pred_check
          %p182 = pneg %p35
        $region34: #{tpu_custom_call.1} parent=31 // pred_check_branch
          %184 = sbr.rel (%p182) target = $region36
        $region35: #{tpu_custom_call.1} parent=31 // pred_region
          %s185 = sand.u32 %s25, 1
          %s186 = sand.u32 %s25, 1
          %s187 = smul.addr %s186, 8
          %s188 = scalar_lea.vmem [#allocation3], %s187
          %s189 = smul.addr %s15, 4
          %s190 = scalar_lea.vmem %s0, %s189
          // Predicated region
          $region37: #{tpu_custom_call.1} parent=35 // pred_check
            _
          $region38: #{tpu_custom_call.1} parent=35 // pred_check_branch
            %192 = sbr.rel (0) target = $region40
          $region39: #{tpu_custom_call.1} parent=35 // pred_region
            // Predicated region
            $region41: #{tpu_custom_call.1} parent=39 // pred_check
              _
            $region42: #{tpu_custom_call.1} parent=39 // pred_check_branch
              %194 = sbr.rel target = $region44
            $region43: #{tpu_custom_call.1} parent=39 // pred_region
              // Predicated region
              $region56: #{tpu_custom_call.1} parent=43 // pred_check
                _
              $region57: #{tpu_custom_call.1} parent=43 // pred_check_branch
                %212 = sbr.rel (0) target = $region59
              $region58: #{tpu_custom_call.1} parent=43 // pred_region
                loop: start=0, step=1, limit=1
                $region60: #{tpu_custom_call.1} parent=58 // loop_pre_header
                  _
                $region61: #{tpu_custom_call.1} parent=58 // loop_header
                  %s214 = sphi 0, %s218
                  %p215 = scmp.ge.s32.totalorder %s214, 1
                  %s219 = sphi %s190, %s190
                  %s220 = sphi %s188, %s188
                $region62: #{tpu_custom_call.1} parent=58 // loop_header_branch
                  %217 = sbr.rel (%p215) target = $region66
                $region63: #{tpu_custom_call.1} parent=58 // loop_body
                  _
                $region64: #{tpu_custom_call.1} parent=58 // loop_footer
                  %s218 = sadd.s32 1, %s214
                $region65: #{tpu_custom_call.1} parent=58 // loop_footer_branch
                  %213 = sbr.rel target = $region61
                $region66: #{tpu_custom_call.1} parent=58 // loop_exit
                  _
                %s222 = ssub.s32 16, 1
                loop: start=0, step=1, limit=1
                $region67: #{tpu_custom_call.1} parent=58 // loop_pre_header
                  _
                $region68: #{tpu_custom_call.1} parent=58 // loop_header
                  %s224 = sphi 0, %s228
                  %p225 = scmp.ge.s32.totalorder %s224, 1
                  %s229 = sphi %s190, %s190
                  %s230 = sphi %s188, %s188
                $region69: #{tpu_custom_call.1} parent=58 // loop_header_branch
                  %227 = sbr.rel (%p225) target = $region73
                $region70: #{tpu_custom_call.1} parent=58 // loop_body
                  %v231 = vld [vmem:[%s229] sm:%s222]
                  %232 = vst [vmem:[%s230] sm:%s222] %v231
                  %v233 = vld [vmem:[%s229 + $0x10] sm:%s222]
                  %234 = vst [vmem:[%s230 + $0x4] sm:%s222] %v233
                $region71: #{tpu_custom_call.1} parent=58 // loop_footer
                  %s228 = sadd.s32 1, %s224
                $region72: #{tpu_custom_call.1} parent=58 // loop_footer_branch
                  %223 = sbr.rel target = $region68
                $region73: #{tpu_custom_call.1} parent=58 // loop_exit
                  _
              $region59: #{tpu_custom_call.1} parent=43 // pred_fallthru
                _
            $region44: #{tpu_custom_call.1} parent=39 // pred_fallthru
              _
            // Predicated region
            $region45: #{tpu_custom_call.1} parent=39 // pred_check
              _
            $region46: #{tpu_custom_call.1} parent=39 // pred_check_branch
              %196 = sbr.rel (0) target = $region48
            $region47: #{tpu_custom_call.1} parent=39 // pred_region
              %s198 = ssub.s32 16, 1
              loop: start=0, step=1, limit=1
              $region49: #{tpu_custom_call.1} parent=47 // loop_pre_header
                _
              $region50: #{tpu_custom_call.1} parent=47 // loop_header
                %s200 = sphi 0, %s204
                %p201 = scmp.ge.s32.totalorder %s200, 1
                %s205 = sphi %s190, %s190
                %s206 = sphi %s188, %s188
              $region51: #{tpu_custom_call.1} parent=47 // loop_header_branch
                %203 = sbr.rel (%p201) target = $region55
              $region52: #{tpu_custom_call.1} parent=47 // loop_body
                %v207 = vld [vmem:[%s205] sm:%s198]
                %208 = vst [vmem:[%s206] sm:%s198] %v207
                %v209 = vld [vmem:[%s205 + $0x10] sm:%s198]
                %210 = vst [vmem:[%s206 + $0x4] sm:%s198] %v209
              $region53: #{tpu_custom_call.1} parent=47 // loop_footer
                %s204 = sadd.s32 1, %s200
              $region54: #{tpu_custom_call.1} parent=47 // loop_footer_branch
                %199 = sbr.rel target = $region50
              $region55: #{tpu_custom_call.1} parent=47 // loop_exit
                _
            $region48: #{tpu_custom_call.1} parent=39 // pred_fallthru
              _
          $region40: #{tpu_custom_call.1} parent=35 // pred_fallthru
            _
          %235 = vnop
        $region36: #{tpu_custom_call.1} parent=31 // pred_fallthru
          _
      $region32: #{tpu_custom_call.1} parent=5 // pred_fallthru
        _
      %p236 = scmp.le.s32.totalorder 1, %s15
      %p237 = scmp.lt.s32.totalorder %s15, 5
      %p238 = pnand %p236, %p237
      %p239 = pneg %p238
      // Predicated region
      $region74: #{tpu_custom_call.1} parent=5 // pred_check
        _
      $region75: #{tpu_custom_call.1} parent=5 // pred_check_branch
        %241 = sbr.rel (%p238) target = $region77
      $region76: #{tpu_custom_call.1} parent=5 // pred_region
        %s242 = ssub.s32 %s15, 1
        %s243 = sand.u32 %s28, 1
        %s244 = sand.u32 %s28, 1
        %s245 = smul.addr %s244, 8
        %s246 = scalar_lea.vmem [#allocation3], %s245
        // Predicated region
        $region78: #{tpu_custom_call.1} parent=76 // pred_check
          %p247 = pneg %p41
        $region79: #{tpu_custom_call.1} parent=76 // pred_check_branch
          %249 = sbr.rel (%p247) target = $region81
        $region80: #{tpu_custom_call.1} parent=76 // pred_region
          _
        $region81: #{tpu_custom_call.1} parent=76 // pred_fallthru
          _
        %s250 = sand.u32 %s28, 1
        %s251 = sand.u32 %s28, 1
        %s252 = smul.addr %s251, 8
        %s253 = scalar_lea.vmem [#allocation3], %s252
        %p254 = pneg %p41
        %p255 = pneg %p38
        %p256 = pneg %p62
        %p257 = pneg %p59
        %p258 = pneg %p83
        %p259 = pneg %p80
        %p260 = pneg %p104
        %p261 = pneg %p101
        %p262 = pneg %p125
        %p263 = pneg %p122
        %p264 = pneg %p151
        %p265 = pneg %p148
        %s266 = sand.u32 %s138, 1
        %s267 = scalar_lea.sflag [#allocation5], %s266
        %s268 = sand.u32 %s138, 1
        %s269 = scalar_lea.vmem [#allocation4], %s268
        %v271 = vld [vmem:[%s1] sm:$0xf]
        %v272 = vld [vmem:[%s1 + $0x4] sm:$0xf]
        %v273 = vld [vmem:[%s1 + $0x8] sm:$0xf]
        %v274 = vld [vmem:[%s1 + $0xc] sm:$0xf]
        %v275 = vld [vmem:[%s1 + $0x10] sm:$0xf]
        %v276 = vld [vmem:[%s1 + $0x14] sm:$0xf]
        %v277 = vld [vmem:[%s1 + $0x18] sm:$0xf]
        %v278 = vld [vmem:[%s1 + $0x1c] sm:$0xf]
        %v279 = vld [vmem:[%s1 + $0x20] sm:$0xf]
        %v280 = vld [vmem:[%s1 + $0x24] sm:$0xf]
        %v281 = vld [vmem:[%s1 + $0x28] sm:$0xf]
        %v282 = vld [vmem:[%s1 + $0x2c] sm:$0xf]
        %v283 = vld [vmem:[%s1 + $0x30] sm:$0xf]
        %v284 = vld [vmem:[%s1 + $0x34] sm:$0xf]
        %v285 = vld [vmem:[%s1 + $0x38] sm:$0xf]
        %v286 = vld [vmem:[%s1 + $0x3c] sm:$0xf]
        %v287 = vld [vmem:[%s246] sm:$0xf]
        %v288 = vld [vmem:[%s246 + $0x4] sm:$0xf]
        %v289 = vld [vmem:[%s2] sm:$0xff]
        %v290 = vld [vmem:[%s2 + $0x8] sm:$0xff]
        %v291 = vld [vmem:[%s2 + $0x10] sm:$0xff]
        %v292 = vld [vmem:[%s2 + $0x18] sm:$0xff]
        %v293 = vld [vmem:[%s2 + $0x20] sm:$0xff]
        %v294 = vld [vmem:[%s2 + $0x28] sm:$0xff]
        %v295 = vld [vmem:[%s2 + $0x30] sm:$0xff]
        %v296 = vld [vmem:[%s2 + $0x38] sm:$0xff]
        %v297 = vld [vmem:[%s2 + $0x40] sm:$0xff]
        %v298 = vld [vmem:[%s2 + $0x48] sm:$0xff]
        %v299 = vld [vmem:[%s2 + $0x50] sm:$0xff]
        %v300 = vld [vmem:[%s2 + $0x58] sm:$0xff]
        %v301 = vld [vmem:[%s2 + $0x60] sm:$0xff]
        %v302 = vld [vmem:[%s2 + $0x68] sm:$0xff]
        %v303 = vld [vmem:[%s2 + $0x70] sm:$0xff]
        %v304 = vld [vmem:[%s2 + $0x78] sm:$0xff]
        %306 = vset.pattern.permute.xlu0 0
        %307 = vperm.xlu0 %306, %v289
        %v308 = vpop.permute.xlu0 %307
        %311 = vset.pattern.permute.xlu0 0
        %312 = vperm.xlu0 %311, %v290
        %v313 = vpop.permute.xlu0 %312
        %316 = vset.pattern.permute.xlu0 0
        %317 = vperm.xlu0 %316, %v291
        %v318 = vpop.permute.xlu0 %317
        %321 = vset.pattern.permute.xlu0 0
        %322 = vperm.xlu0 %321, %v292
        %v323 = vpop.permute.xlu0 %322
        %326 = vset.pattern.permute.xlu0 0
        %327 = vperm.xlu0 %326, %v293
        %v328 = vpop.permute.xlu0 %327
        %331 = vset.pattern.permute.xlu0 0
        %332 = vperm.xlu0 %331, %v294
        %v333 = vpop.permute.xlu0 %332
        %336 = vset.pattern.permute.xlu0 0
        %337 = vperm.xlu0 %336, %v295
        %v338 = vpop.permute.xlu0 %337
        %341 = vset.pattern.permute.xlu0 0
        %342 = vperm.xlu0 %341, %v296
        %v343 = vpop.permute.xlu0 %342
        %346 = vset.pattern.permute.xlu0 0
        %347 = vperm.xlu0 %346, %v297
        %v348 = vpop.permute.xlu0 %347
        %351 = vset.pattern.permute.xlu0 0
        %352 = vperm.xlu0 %351, %v298
        %v353 = vpop.permute.xlu0 %352
        %356 = vset.pattern.permute.xlu0 0
        %357 = vperm.xlu0 %356, %v299
        %v358 = vpop.permute.xlu0 %357
        %361 = vset.pattern.permute.xlu0 0
        %362 = vperm.xlu0 %361, %v300
        %v363 = vpop.permute.xlu0 %362
        %366 = vset.pattern.permute.xlu0 0
        %367 = vperm.xlu0 %366, %v301
        %v368 = vpop.permute.xlu0 %367
        %371 = vset.pattern.permute.xlu0 0
        %372 = vperm.xlu0 %371, %v302
        %v373 = vpop.permute.xlu0 %372
        %376 = vset.pattern.permute.xlu0 0
        %377 = vperm.xlu0 %376, %v303
        %v378 = vpop.permute.xlu0 %377
        %381 = vset.pattern.permute.xlu0 0
        %382 = vperm.xlu0 %381, %v304
        %v383 = vpop.permute.xlu0 %382
        %v401 = vunpack.c.l.b16 %v271
        %v402 = vunpack.c.l.b16 %v272
        %v403 = vunpack.c.l.b16 %v273
        %v404 = vunpack.c.l.b16 %v274
        %v405 = vunpack.c.l.b16 %v275
        %v406 = vunpack.c.l.b16 %v276
        %v407 = vunpack.c.l.b16 %v277
        %v408 = vunpack.c.l.b16 %v278
        %v409 = vunpack.c.l.b16 %v279
        %v410 = vunpack.c.l.b16 %v280
        %v411 = vunpack.c.l.b16 %v281
        %v412 = vunpack.c.l.b16 %v282
        %v413 = vunpack.c.l.b16 %v283
        %v414 = vunpack.c.l.b16 %v284
        %v415 = vunpack.c.l.b16 %v285
        %v416 = vunpack.c.l.b16 %v286
        %v417 = vpack.c.b16 %v402, %v401
        %v418 = vpack.c.b16 %v404, %v403
        %v419 = vpack.c.b16 %v406, %v405
        %v420 = vpack.c.b16 %v408, %v407
        %v421 = vpack.c.b16 %v410, %v409
        %v422 = vpack.c.b16 %v412, %v411
        %v423 = vpack.c.b16 %v414, %v413
        %v424 = vpack.c.b16 %v416, %v415
        %v427 = vunpack.c.l.b16 %v287
        %v428 = vunpack.c.l.b16 %v288
        %v429 = vpack.c.b16 %v428, %v427
        %vm431 = vcmask 130048
        %v433 = vsel %vm431, %v417, 0
        %v436 = vsel %vm431, %v418, 0
        %v439 = vsel %vm431, %v419, 0
        %v442 = vsel %vm431, %v420, 0
        %v445 = vsel %vm431, %v421, 0
        %v448 = vsel %vm431, %v422, 0
        %v451 = vsel %vm431, %v423, 0
        %v454 = vsel %vm431, %v424, 0
        %456 = vmatprep.subr.bf16.mxu0 0
        %457 = vmatpush1.bf16.msra.mxu0 0
        %458 = vmatprep.subr.bf16.mxu0 0
        %459 = vmatpush1.bf16.msra.mxu0 0
        %460 = vmatprep.subr.bf16.mxu0 0
        %461 = vmatpush1.bf16.msra.mxu0 0
        %462 = vmatprep.subr.bf16.mxu0 0
        %463 = vmatpush1.bf16.msra.mxu0 0
        %464 = vmatprep.subr.bf16.mxu0 0
        %465 = vmatpush1.bf16.msra.mxu0 0
        %466 = vmatprep.subr.bf16.mxu0 0
        %467 = vmatpush1.bf16.msra.mxu0 0
        %468 = vmatprep.subr.bf16.mxu0 0
        %469 = vmatpush1.bf16.msra.mxu0 0
        %470 = vmatprep.subr.bf16.mxu0 0
        %471 = vmatpush1.bf16.msra.mxu0 %v429
        %472 = vmatprep.subr.bf16.mxu0 0
        %473 = vmatpush2.bf16.msra.mxu0 0
        %474 = vmatprep.subr.bf16.mxu0 0
        %475 = vmatpush2.bf16.msra.mxu0 0
        %476 = vmatprep.subr.bf16.mxu0 0
        %477 = vmatpush2.bf16.msra.mxu0 0
        %478 = vmatprep.subr.bf16.mxu0 0
        %479 = vmatpush2.bf16.msra.mxu0 0
        %480 = vmatprep.subr.bf16.mxu0 0
        %481 = vmatpush2.bf16.msra.mxu0 0
        %482 = vmatprep.subr.bf16.mxu0 0
        %483 = vmatpush2.bf16.msra.mxu0 0
        %484 = vmatprep.subr.bf16.mxu0 0
        %485 = vmatpush2.bf16.msra.mxu0 0
        %486 = vmatprep.subr.bf16.mxu0 0
        %487 = vmatpush2.bf16.msra.mxu0 0
        %488 = vmatprep.mubr.bf16.mxu0 0
        %489 = vmatmul.mubr.bf16.gmra.mxu0 %v433
        %v490 = vpop.f32.mrf.mxu0
        %v491 = vadd.f32 %v308, %v490
        %v492 = vpop.f32.mrf.mxu0
        %v493 = vpop.f32.mrf.mxu0
        %v494 = vadd.f32 %v313, %v493
        %v495 = vpop.f32.mrf.mxu0
        %496 = vmatprep.mubr.bf16.mxu0 0
        %497 = vmatmul.mubr.bf16.gmra.mxu0 %v436
        %v498 = vpop.f32.mrf.mxu0
        %v499 = vadd.f32 %v318, %v498
        %v500 = vpop.f32.mrf.mxu0
        %v501 = vpop.f32.mrf.mxu0
        %v502 = vadd.f32 %v323, %v501
        %v503 = vpop.f32.mrf.mxu0
        %504 = vmatprep.mubr.bf16.mxu0 0
        %505 = vmatmul.mubr.bf16.gmra.mxu0 %v439
        %v506 = vpop.f32.mrf.mxu0
        %v507 = vadd.f32 %v328, %v506
        %v508 = vpop.f32.mrf.mxu0
        %v509 = vpop.f32.mrf.mxu0
        %v510 = vadd.f32 %v333, %v509
        %v511 = vpop.f32.mrf.mxu0
        %512 = vmatprep.mubr.bf16.mxu0 0
        %513 = vmatmul.mubr.bf16.gmra.mxu0 %v442
        %v514 = vpop.f32.mrf.mxu0
        %v515 = vadd.f32 %v338, %v514
        %v516 = vpop.f32.mrf.mxu0
        %v517 = vpop.f32.mrf.mxu0
        %v518 = vadd.f32 %v343, %v517
        %v519 = vpop.f32.mrf.mxu0
        %520 = vmatprep.mubr.bf16.mxu0 0
        %521 = vmatmul.mubr.bf16.gmra.mxu0 %v445
        %v522 = vpop.f32.mrf.mxu0
        %v523 = vadd.f32 %v348, %v522
        %v524 = vpop.f32.mrf.mxu0
        %v525 = vpop.f32.mrf.mxu0
        %v526 = vadd.f32 %v353, %v525
        %v527 = vpop.f32.mrf.mxu0
        %528 = vmatprep.mubr.bf16.mxu0 0
        %529 = vmatmul.mubr.bf16.gmra.mxu0 %v448
        %v530 = vpop.f32.mrf.mxu0
        %v531 = vadd.f32 %v358, %v530
        %v532 = vpop.f32.mrf.mxu0
        %v533 = vpop.f32.mrf.mxu0
        %v534 = vadd.f32 %v363, %v533
        %v535 = vpop.f32.mrf.mxu0
        %536 = vmatprep.mubr.bf16.mxu0 0
        %537 = vmatmul.mubr.bf16.gmra.mxu0 %v451
        %v538 = vpop.f32.mrf.mxu0
        %v539 = vadd.f32 %v368, %v538
        %v540 = vpop.f32.mrf.mxu0
        %v541 = vpop.f32.mrf.mxu0
        %v542 = vadd.f32 %v373, %v541
        %v543 = vpop.f32.mrf.mxu0
        %544 = vmatprep.mubr.bf16.mxu0 0
        %545 = vmatmul.mubr.bf16.gmra.mxu0 %v454
        %v546 = vpop.f32.mrf.mxu0
        %v547 = vadd.f32 %v378, %v546
        %v548 = vpop.f32.mrf.mxu0
        %v549 = vpop.f32.mrf.mxu0
        %v550 = vadd.f32 %v383, %v549
        %v551 = vpop.f32.mrf.mxu0
        %552 = vdwg.mxu0
        %v553 = vmax.f32 %v491, 0.0
        %v554 = vmax.f32 %v494, 0.0
        %v555 = vmax.f32 %v499, 0.0
        %v556 = vmax.f32 %v502, 0.0
        %v557 = vmax.f32 %v507, 0.0
        %v558 = vmax.f32 %v510, 0.0
        %v559 = vmax.f32 %v515, 0.0
        %v560 = vmax.f32 %v518, 0.0
        %v561 = vmax.f32 %v523, 0.0
        %v562 = vmax.f32 %v526, 0.0
        %v563 = vmax.f32 %v531, 0.0
        %v564 = vmax.f32 %v534, 0.0
        %v565 = vmax.f32 %v539, 0.0
        %v566 = vmax.f32 %v542, 0.0
        %v567 = vmax.f32 %v547, 0.0
        %v568 = vmax.f32 %v550, 0.0
        %v569 = vld [vmem:[%s3] sm:$0x1]
        %s570 = sld [smem:[#allocation2]]
        %v571 = vstv %s570
        %572 = vmatprep.subr.mxu0 0.0
        %573 = vmatpush1.msra.mxu0 %v568
        %574 = vmatprep.subr.mxu0 0.0
        %575 = vmatpush1.msra.mxu0 %v567
        %576 = vmatprep.subr.mxu0 0.0
        %577 = vmatpush1.msra.mxu0 %v566
        %578 = vmatprep.subr.mxu0 0.0
        %579 = vmatpush1.msra.mxu0 %v565
        %580 = vmatprep.subr.mxu0 0.0
        %581 = vmatpush1.msra.mxu0 %v564
        %582 = vmatprep.subr.mxu0 0.0
        %583 = vmatpush1.msra.mxu0 %v563
        %584 = vmatprep.subr.mxu0 0.0
        %585 = vmatpush1.msra.mxu0 %v562
        %586 = vmatprep.subr.mxu0 0.0
        %587 = vmatpush1.msra.mxu0 %v561
        %588 = vmatprep.subr.mxu0 0.0
        %589 = vmatpush1.msra.mxu0 %v560
        %590 = vmatprep.subr.mxu0 0.0
        %591 = vmatpush1.msra.mxu0 %v559
        %592 = vmatprep.subr.mxu0 0.0
        %593 = vmatpush1.msra.mxu0 %v558
        %594 = vmatprep.subr.mxu0 0.0
        %595 = vmatpush1.msra.mxu0 %v557
        %596 = vmatprep.subr.mxu0 0.0
        %597 = vmatpush1.msra.mxu0 %v556
        %598 = vmatprep.subr.mxu0 0.0
        %599 = vmatpush1.msra.mxu0 %v555
        %600 = vmatprep.subr.mxu0 0.0
        %601 = vmatpush1.msra.mxu0 %v554
        %602 = vmatprep.subr.mxu0 0.0
        %603 = vmatpush1.msra.mxu0 %v553
        %604 = vmatprep.subr.mxu0 0.0
        %605 = vmatpush2.msra.mxu0 0.0
        %606 = vmatprep.subr.mxu0 0.0
        %607 = vmatpush2.msra.mxu0 0.0
        %608 = vmatprep.subr.mxu0 0.0
        %609 = vmatpush2.msra.mxu0 0.0
        %610 = vmatprep.subr.mxu0 0.0
        %611 = vmatpush2.msra.mxu0 0.0
        %612 = vmatprep.subr.mxu0 0.0
        %613 = vmatpush2.msra.mxu0 0.0
        %614 = vmatprep.subr.mxu0 0.0
        %615 = vmatpush2.msra.mxu0 0.0
        %616 = vmatprep.subr.mxu0 0.0
        %617 = vmatpush2.msra.mxu0 0.0
        %618 = vmatprep.subr.mxu0 0.0
        %619 = vmatpush2.msra.mxu0 0.0
        %620 = vmatprep.subr.mxu0 0.0
        %621 = vmatpush2.msra.mxu0 0.0
        %622 = vmatprep.subr.mxu0 0.0
        %623 = vmatpush2.msra.mxu0 0.0
        %624 = vmatprep.subr.mxu0 0.0
        %625 = vmatpush2.msra.mxu0 0.0
        %626 = vmatprep.subr.mxu0 0.0
        %627 = vmatpush2.msra.mxu0 0.0
        %628 = vmatprep.subr.mxu0 0.0
        %629 = vmatpush2.msra.mxu0 0.0
        %630 = vmatprep.subr.mxu0 0.0
        %631 = vmatpush2.msra.mxu0 0.0
        %632 = vmatprep.subr.mxu0 0.0
        %633 = vmatpush2.msra.mxu0 0.0
        %634 = vmatprep.subr.mxu0 0.0
        %635 = vmatpush2.msra.mxu0 0.0
        %636 = vmatprep.mubr.f32.mxu0 0.0
        %637 = vmatmul.mubr.f32.gmra.mxu0 %v569
        %v638 = vpop.f32.mrf.mxu0
        %v639 = vadd.f32 %v571, %v638
        %v640 = vpop.f32.mrf.mxu0
        %641 = vdwg.mxu0
        %v642 = vxor.u32 %v639, 2147483648
        %v643 = vmul.f32 %v642, 1.442695
        %v644 = vpow.pop %v643
        %v645 = vadd.f32 %v644, 1.0
        %v646 = vrcp.pop %v645
        %v647 = vmul.f32 1.0, %v646
        %648 = vst [vmem:[%s269] sm:$0x1] %v647
        %s649 = sand.u32 %s138, 1
        %s650 = scalar_lea.sflag [#allocation5], %s649
        %s651 = sand.u32 %s138, 1
        %s652 = scalar_lea.vmem [#allocation4], %s651
        // Predicated region
        $region82: #{tpu_custom_call.1} parent=76 // pred_check
          %p653 = pneg %p148
        $region83: #{tpu_custom_call.1} parent=76 // pred_check_branch
          %655 = sbr.rel (%p653) target = $region85
        $region84: #{tpu_custom_call.1} parent=76 // pred_region
          %s657 = ssub.s32 16, 16
          %658 = vsyncadd %s650, %s657
          %s659 = smul.addr %s20, 16
          %s660 = scalar_lea.hbm %s5, %s659
          %s662 = sshll.u32 %s652, 4
          %s663 = int_to_ptr.vmem [resolvable:$true] %s662
          %665 = dma.vmem_to_hbm [thread:$0]  %s663, 16, %s660, %s650
        $region85: #{tpu_custom_call.1} parent=76 // pred_fallthru
          _
      $region77: #{tpu_custom_call.1} parent=5 // pred_fallthru
        _
      %p666 = scmp.le.s32.totalorder 2, %s15
      // Predicated region
      $region86: #{tpu_custom_call.1} parent=5 // pred_check
        %p667 = pneg %p666
      $region87: #{tpu_custom_call.1} parent=5 // pred_check_branch
        %669 = sbr.rel (%p667) target = $region89
      $region88: #{tpu_custom_call.1} parent=5 // pred_region
        %s670 = ssub.s32 %s15, 2
        // Predicated region
        $region90: #{tpu_custom_call.1} parent=88 // pred_check
          %p671 = pneg %p154
        $region91: #{tpu_custom_call.1} parent=88 // pred_check_branch
          %673 = sbr.rel (%p671) target = $region93
        $region92: #{tpu_custom_call.1} parent=88 // pred_region
          %s674 = sand.u32 %s139, 1
          %s675 = scalar_lea.sflag [#allocation5], %s674
          %s676 = sand.u32 %s139, 1
          %s677 = scalar_lea.vmem [#allocation4], %s676
          %678 = dma.done %s675, 16
        $region93: #{tpu_custom_call.1} parent=88 // pred_fallthru
          _
      $region89: #{tpu_custom_call.1} parent=5 // pred_fallthru
        _
    $region6: #{tpu_custom_call.1} parent=1 // loop_footer
      %s19 = sadd.s32 1, %s15
    $region7: #{tpu_custom_call.1} parent=1 // loop_footer_branch
      %14 = sbr.rel target = $region3
    $region8: #{tpu_custom_call.1} parent=1 // loop_exit
      _
    %679 = vsyncpa [#allocation5], 1
    %s680 = scalar_lea.sflag [#allocation5], 1
    %681 = vsyncpa %s680, 1

</llo_original>
